<compile_context>
chip_gen: v7x
topology: tpu7x:2x2x1
jax: 0.10.0
libtpu: 0.0.40
codegen_flags: <defaults>
</compile_context>

<pallas_src>
import functools

import jax
import jax.numpy as jnp
from jax import lax
from jax.experimental import pallas as pl
from jax.experimental.pallas import tpu as pltpu

_LN_EPS = 1e-5


def _default_vmem_limit():
    # ~75% of physical VMEM, capped at 100 MiB (v5e/v6e: 128 MiB phys; v7x: 64 MiB phys).
    try:
        cap = pltpu.get_tpu_info().vmem_capacity_bytes
        return int(min(100 * 1024 * 1024, 0.75 * cap))
    except Exception:
        return 48 * 1024 * 1024  # safe everywhere, above the 16/32 MiB scoped defaults


_VMEM_LIMIT = _default_vmem_limit()


def _cparams(semantics):
    return pltpu.CompilerParams(dimension_semantics=semantics,
                                vmem_limit_bytes=_VMEM_LIMIT)


def _pick_tile(m, max_tile):
    # full array if it fits, else a multiple-of-8 tile (satisfies sublane rule)
    return m if m <= max_tile else max_tile


def _mm(a, b, mm_dtype):
    # MXU matmul with f32 accumulation; optional bf16 operand cast for throughput.
    if mm_dtype is not None:
        a = a.astype(mm_dtype)
        b = b.astype(mm_dtype)
    return jnp.dot(a, b, preferred_element_type=jnp.float32)


def _layernorm_f32(z, g, b, eps):
    mean = jnp.mean(z, axis=-1, keepdims=True)
    c = z - mean
    var = jnp.mean(c * c, axis=-1, keepdims=True)
    return c * lax.rsqrt(var + eps) * g + b


# ----------------------------- Pallas kernel bodies ------------------------------

def _multi_linear_kernel(*refs, n_out, mm_dtype):
    # refs = (x, w0, b0, ..., w_{n-1}, b_{n-1}, o0, ..., o_{n-1})
    # One x tile load, one dot + lane-dense store per output (no post-hoc slicing).
    x = refs[0][...]
    for i in range(n_out):
        w_ref = refs[1 + 2 * i]
        b_ref = refs[2 + 2 * i]
        o_ref = refs[1 + 2 * n_out + i]
        y = _mm(x, w_ref[...], mm_dtype) + b_ref[...]
        o_ref[...] = y.astype(o_ref.dtype)


def _linear_res_ln_kernel(x_ref, w_ref, b_ref, r_ref, g_ref, bb_ref, o_ref, *, eps, mm_dtype):
    # LayerNorm(residual + x @ w + b)
    y = _mm(x_ref[...], w_ref[...], mm_dtype) + b_ref[...]
    z = r_ref[...].astype(jnp.float32) + y
    o_ref[...] = _layernorm_f32(z, g_ref[...], bb_ref[...], eps).astype(o_ref.dtype)


def _ffn_res_ln_kernel(x_ref, w1_ref, b1_ref, w2_ref, b2_ref, g_ref, bb_ref, o_ref, *, eps, mm_dtype):
    # LayerNorm(x + linear2(relu(linear1(x)))) -- dff intermediate stays in VMEM
    x = x_ref[...]
    h = _mm(x, w1_ref[...], mm_dtype) + b1_ref[...]
    h = jnp.maximum(h, 0.0)
    y = _mm(h, w2_ref[...], mm_dtype) + b2_ref[...]
    z = x.astype(jnp.float32) + y
    o_ref[...] = _layernorm_f32(z, g_ref[...], bb_ref[...], eps).astype(o_ref.dtype)


_DN_QK = (((1,), (1,)), ((), ()))  # contract last dims: (tq, dh) x (Lk, dh) -> (tq, Lk)


def _self_attn_kernel(q_ref, k_ref, v_ref, o_ref, *, nhead, scale):
    # one (batch, q-tile) block; all heads in-body; single lane-dense (tq, d) store
    q = q_ref[...].astype(jnp.float32) * scale        # (tq, D)
    k = k_ref[...].astype(jnp.float32)                # (Lk, D)
    v = v_ref[...].astype(jnp.float32)                # (Lk, D)
    dh = q.shape[-1] // nhead
    outs = []
    for h in range(nhead):
        sl = slice(h * dh, (h + 1) * dh)
        s = lax.dot_general(q[:, sl], k[:, sl], _DN_QK, preferred_element_type=jnp.float32)
        s = s - jnp.max(s, axis=-1, keepdims=True)
        p = jnp.exp(s)
        pn = p / jnp.sum(p, axis=-1, keepdims=True)   # exact softmax
        outs.append(jnp.dot(pn, v[:, sl], preferred_element_type=jnp.float32))
    o_ref[...] = jnp.concatenate(outs, axis=-1).astype(o_ref.dtype)


def _cross_attn_kernel(*refs, nhead, scale, inv_nhead, has_pos):
    # one (batch, q-tile) block; all heads in-body.
    # abs_pos: score = qc@kc.T + qp@kp.T per head (== concat along the contraction dim).
    # head-mean attention weights accumulated in-body -> single (tq, Lk) f32 store.
    if has_pos:
        qc_ref, qp_ref, kc_ref, kp_ref, v_ref, o_ref, w_ref = refs
    else:
        qc_ref, kc_ref, v_ref, o_ref, w_ref = refs
    qc = qc_ref[...].astype(jnp.float32) * scale      # (tq, D)
    kc = kc_ref[...].astype(jnp.float32)              # (Lk, D)
    v = v_ref[...].astype(jnp.float32)                # (Lk, D)
    if has_pos:
        qp = qp_ref[...].astype(jnp.float32) * scale
        kp = kp_ref[...].astype(jnp.float32)
    dh = qc.shape[-1] // nhead
    outs = []
    w_acc = None
    for h in range(nhead):
        sl = slice(h * dh, (h + 1) * dh)
        s = lax.dot_general(qc[:, sl], kc[:, sl], _DN_QK, preferred_element_type=jnp.float32)
        if has_pos:
            s = s + lax.dot_general(qp[:, sl], kp[:, sl], _DN_QK,
                                    preferred_element_type=jnp.float32)
        s = s - jnp.max(s, axis=-1, keepdims=True)
        p = jnp.exp(s)
        pn = p / jnp.sum(p, axis=-1, keepdims=True)   # exact softmax
        outs.append(jnp.dot(pn, v[:, sl], preferred_element_type=jnp.float32))
        w_acc = pn if w_acc is None else w_acc + pn
    o_ref[...] = jnp.concatenate(outs, axis=-1).astype(o_ref.dtype)
    w_ref[...] = (w_acc * inv_nhead).astype(w_ref.dtype)


# ----------------------------- pallas_call wrappers ------------------------------

def pallas_multi_linear(x2d, weights, biases, mm_dtype=None, max_tile=512):
    """x2d (M, K) against several (K, N_i) weights -> tuple of (M, N_i). M-tiled, weights pinned."""
    M, K = x2d.shape
    n_out = len(weights)
    tm = _pick_tile(M, max_tile)
    in_specs = [pl.BlockSpec((tm, K), lambda i: (i, 0))]
    args = [x2d]
    for w, b in zip(weights, biases):
        N = w.shape[1]
        in_specs.append(pl.BlockSpec((K, N), lambda i: (0, 0)))
        in_specs.append(pl.BlockSpec((1, N), lambda i: (0, 0)))
        args += [w, b.reshape(1, N)]
    out_specs = [pl.BlockSpec((tm, w.shape[1]), lambda i: (i, 0)) for w in weights]
    out_shape = tuple(jax.ShapeDtypeStruct((M, w.shape[1]), x2d.dtype) for w in weights)
    return pl.pallas_call(
        functools.partial(_multi_linear_kernel, n_out=n_out, mm_dtype=mm_dtype),
        grid=(pl.cdiv(M, tm),),
        in_specs=in_specs,
        out_specs=out_specs,
        out_shape=out_shape,
        compiler_params=_cparams(("parallel",)),
    )(*args)


def pallas_linear(x2d, w, b, mm_dtype=None, max_tile=512):
    return pallas_multi_linear(x2d, [w], [b], mm_dtype=mm_dtype, max_tile=max_tile)[0]


def pallas_linear_res_ln(x2d, w, b, res2d, gamma, beta, eps=_LN_EPS, mm_dtype=None, max_tile=512):
    """LayerNorm(res + x @ w + b), M-tiled."""
    M, K = x2d.shape
    N = w.shape[1]
    tm = _pick_tile(M, max_tile)
    return pl.pallas_call(
        functools.partial(_linear_res_ln_kernel, eps=eps, mm_dtype=mm_dtype),
        grid=(pl.cdiv(M, tm),),
        in_specs=[
            pl.BlockSpec((tm, K), lambda i: (i, 0)),
            pl.BlockSpec((K, N), lambda i: (0, 0)),
            pl.BlockSpec((1, N), lambda i: (0, 0)),
            pl.BlockSpec((tm, N), lambda i: (i, 0)),
            pl.BlockSpec((1, N), lambda i: (0, 0)),
            pl.BlockSpec((1, N), lambda i: (0, 0)),
        ],
        out_specs=pl.BlockSpec((tm, N), lambda i: (i, 0)),
        out_shape=jax.ShapeDtypeStruct((M, N), x2d.dtype),
        compiler_params=_cparams(("parallel",)),
    )(x2d, w, b.reshape(1, N), res2d, gamma.reshape(1, N), beta.reshape(1, N))


def pallas_ffn_res_ln(x2d, w1, b1, w2, b2, gamma, beta, eps=_LN_EPS, mm_dtype=None, max_tile=256):
    """LayerNorm(x + linear2(relu(linear1(x)))), M-tiled; dff intermediate in VMEM."""
    M, D = x2d.shape
    F = w1.shape[1]
    tm = _pick_tile(M, max_tile)
    return pl.pallas_call(
        functools.partial(_ffn_res_ln_kernel, eps=eps, mm_dtype=mm_dtype),
        grid=(pl.cdiv(M, tm),),
        in_specs=[
            pl.BlockSpec((tm, D), lambda i: (i, 0)),
            pl.BlockSpec((D, F), lambda i: (0, 0)),
            pl.BlockSpec((1, F), lambda i: (0, 0)),
            pl.BlockSpec((F, D), lambda i: (0, 0)),
            pl.BlockSpec((1, D), lambda i: (0, 0)),
            pl.BlockSpec((1, D), lambda i: (0, 0)),
            pl.BlockSpec((1, D), lambda i: (0, 0)),
        ],
        out_specs=pl.BlockSpec((tm, D), lambda i: (i, 0)),
        out_shape=jax.ShapeDtypeStruct((M, D), x2d.dtype),
        compiler_params=_cparams(("parallel",)),
    )(x2d, w1, b1.reshape(1, F), w2, b2.reshape(1, D),
      gamma.reshape(1, D), beta.reshape(1, D))


def pallas_self_attention(q, k, v, nhead, scale, max_q_tile=128):
    """q (B, Lq, D), k/v (B, Lk, D) -> (B, Lq, D). Grid (B, q_tiles), all heads per step."""
    B, Lq, D = q.shape
    Lk = k.shape[1]
    tq = Lq if Lq <= max_q_tile else max_q_tile
    return pl.pallas_call(
        functools.partial(_self_attn_kernel, nhead=nhead, scale=scale),
        grid=(B, pl.cdiv(Lq, tq)),
        in_specs=[
            pl.BlockSpec((None, tq, D), lambda b, qi: (b, qi, 0)),
            pl.BlockSpec((None, Lk, D), lambda b, qi: (b, 0, 0)),
            pl.BlockSpec((None, Lk, D), lambda b, qi: (b, 0, 0)),
        ],
        out_specs=pl.BlockSpec((None, tq, D), lambda b, qi: (b, qi, 0)),
        out_shape=jax.ShapeDtypeStruct((B, Lq, D), q.dtype),
        compiler_params=_cparams(("parallel", "parallel")),
    )(q, k, v)


def pallas_cross_attention(qc, kc, v, nhead, scale, qp=None, kp=None, max_q_tile=128):
    """Returns (out (B, Lq, D), head-mean weights (B, Lq, Lk) f32).
    Grid (B, q_tiles), both parallel; heads computed (and weight-averaged) in-body."""
    B, Lq, D = qc.shape
    Lk = kc.shape[1]
    has_pos = qp is not None
    tq = Lq if Lq <= max_q_tile else max_q_tile
    q_spec = pl.BlockSpec((None, tq, D), lambda b, qi: (b, qi, 0))
    kv_spec = pl.BlockSpec((None, Lk, D), lambda b, qi: (b, 0, 0))
    if has_pos:
        args = (qc, qp, kc, kp, v)
        in_specs = [q_spec, q_spec, kv_spec, kv_spec, kv_spec]
    else:
        args = (qc, kc, v)
        in_specs = [q_spec, kv_spec, kv_spec]
    return pl.pallas_call(
        functools.partial(_cross_attn_kernel, nhead=nhead, scale=scale,
                          inv_nhead=1.0 / nhead, has_pos=has_pos),
        grid=(B, pl.cdiv(Lq, tq)),
        in_specs=in_specs,
        out_specs=[
            pl.BlockSpec((None, tq, D), lambda b, qi: (b, qi, 0)),
            pl.BlockSpec((None, tq, Lk), lambda b, qi: (b, qi, 0)),
        ],
        out_shape=(
            jax.ShapeDtypeStruct((B, Lq, D), qc.dtype),
            jax.ShapeDtypeStruct((B, Lq, Lk), jnp.float32),
        ),
        compiler_params=_cparams(("parallel", "parallel")),
    )(*args)


# ----------------------------- forward (plain-JAX glue) -----------------------------

def transformer_decoder_layer_forward(p, tgt, memory, query_coords_float, key_coords_float,
                                      pos, query_pos, query_sine_embed, *, nhead,
                                      quant_grid_length, grid_size, abs_pos=True,
                                      is_first=False, matmul_dtype=None):
    # rel_query/rel_key/rel_value default to False -> the quantized rel_idx has no effect;
    # the coords/grid args are accepted but unused.
    del query_coords_float, key_coords_float, quant_grid_length, grid_size

    bs, nq, d = tgt.shape
    hw = memory.shape[1]
    dh = d // nhead

    # batch-first everywhere; row-wise kernels are order independent
    qp2d = jnp.transpose(query_pos, (1, 0, 2)).reshape(bs * nq, d)
    pos2d = jnp.transpose(pos, (1, 0, 2)).reshape(bs * hw, d)
    qse2d = jnp.transpose(query_sine_embed, (1, 0, 2)).reshape(bs * nq, d)
    tgt2d = tgt.reshape(bs * nq, d)
    mem2d = memory.reshape(bs * hw, d)

    # ------------------------------ self attention ------------------------------
    q_c, k_c, v = pallas_multi_linear(
        tgt2d,
        [p['sa_qcontent_w'], p['sa_kcontent_w'], p['sa_v_w']],
        [p['sa_qcontent_b'], p['sa_kcontent_b'], p['sa_v_b']],
        mm_dtype=matmul_dtype)
    if is_first:
        q_p, k_p, ca_qpos = pallas_multi_linear(
            qp2d,
            [p['sa_qpos_w'], p['sa_kpos_w'], p['ca_qpos_w']],
            [p['sa_qpos_b'], p['sa_kpos_b'], p['ca_qpos_b']],
            mm_dtype=matmul_dtype)
    else:
        q_p, k_p = pallas_multi_linear(
            qp2d, [p['sa_qpos_w'], p['sa_kpos_w']], [p['sa_qpos_b'], p['sa_kpos_b']],
            mm_dtype=matmul_dtype)
        ca_qpos = None

    if abs_pos:
        q, k = q_c + q_p, k_c + k_p
    else:
        q, k = q_c, k_c

    sa_o = pallas_self_attention(q.reshape(bs, nq, d), k.reshape(bs, nq, d),
                                 v.reshape(bs, nq, d), nhead, float(dh) ** -0.5)
    # out-proj + residual + norm1 fused
    x = pallas_linear_res_ln(sa_o.reshape(bs * nq, d), p['sa_out_w'], p['sa_out_b'],
                             tgt2d, p['norm1_g'], p['norm1_b'], mm_dtype=matmul_dtype)

    # ------------------------------ cross attention ------------------------------
    q_content = pallas_linear(x, p['ca_qcontent_w'], p['ca_qcontent_b'], mm_dtype=matmul_dtype)
    k_content, v = pallas_multi_linear(
        mem2d, [p['ca_kcontent_w'], p['ca_v_w']], [p['ca_kcontent_b'], p['ca_v_b']],
        mm_dtype=matmul_dtype, max_tile=1024)
    k_pos = pallas_linear(pos2d, p['ca_kpos_w'], p['ca_kpos_b'],
                          mm_dtype=matmul_dtype, max_tile=1024)

    if is_first:
        qc = q_content + ca_qpos
        kc = k_content + k_pos
    else:
        qc, kc = q_content, k_content

    if abs_pos:
        qp_sine = pallas_linear(qse2d, p['ca_qpos_sine_w'], p['ca_qpos_sine_b'],
                                mm_dtype=matmul_dtype)
        # content/positional kept separate; score adds the two partial dots in-kernel
        ca_o, src_weight = pallas_cross_attention(
            qc.reshape(bs, nq, d), kc.reshape(bs, hw, d), v.reshape(bs, hw, d),
            nhead, float(2 * dh) ** -0.5,
            qp=qp_sine.reshape(bs, nq, d), kp=k_pos.reshape(bs, hw, d))
    else:
        ca_o, src_weight = pallas_cross_attention(
            qc.reshape(bs, nq, d), kc.reshape(bs, hw, d), v.reshape(bs, hw, d),
            nhead, float(dh) ** -0.5)

    x = pallas_linear_res_ln(ca_o.reshape(bs * nq, d), p['ca_out_w'], p['ca_out_b'],
                             x, p['norm2_g'], p['norm2_b'], mm_dtype=matmul_dtype)

    # ------------------------------ FFN (fully fused) ------------------------------
    x = pallas_ffn_res_ln(x, p['linear1_w'], p['linear1_b'],
                          p['linear2_w'], p['linear2_b'],
                          p['norm3_g'], p['norm3_b'], mm_dtype=matmul_dtype)

    return x.reshape(bs, nq, d), src_weight          # (bs, nq, d), (bs, nq, hw)


# ----------------------------- parameter init -----------------------------

def init_params(key, d, dff):
    names_dd = ['sa_qcontent', 'sa_qpos', 'sa_kcontent', 'sa_kpos', 'sa_v', 'sa_out',
                'ca_qcontent', 'ca_qpos', 'ca_kcontent', 'ca_kpos', 'ca_v',
                'ca_qpos_sine', 'ca_out']
    keys = jax.random.split(key, len(names_dd) + 2)

    def lin(kin, din, dout):
        kw, kb = jax.random.split(kin)
        bound = float(din) ** -0.5
        w = jax.random.uniform(kw, (din, dout), jnp.float32, -bound, bound)
        b = jax.random.uniform(kb, (dout,), jnp.float32, -bound, bound)
        return w, b

    p = {}
    for n, kn in zip(names_dd, keys[:len(names_dd)]):
        w, b = lin(kn, d, d)
        p[n + '_w'], p[n + '_b'] = w, b
    p['linear1_w'], p['linear1_b'] = lin(keys[-2], d, dff)
    p['linear2_w'], p['linear2_b'] = lin(keys[-1], dff, d)
    for n in ['norm1', 'norm2', 'norm3']:
        p[n + '_g'] = jnp.ones((d,), jnp.float32)
        p[n + '_b'] = jnp.zeros((d,), jnp.float32)
    return p


# ----------------------------------- main -----------------------------------

if __name__ == "__main__":
    d_model, nhead, dff = 32, 4, 64
    bs, nq, hw = 2, 8, 16
    quant_grid_length, grid_size = 4, 0.5

    root = jax.random.PRNGKey(0)
    ks = jax.random.split(root, 8)
    params = init_params(ks[0], d_model, dff)

    tgt = jax.random.normal(ks[1], (bs, nq, d_model), jnp.float32)
    memory = jax.random.normal(ks[2], (bs, hw, d_model), jnp.float32)
    query_coords_float = jax.random.uniform(ks[3], (nq, bs, 3), jnp.float32, -1.0, 1.0)
    key_coords_float = jax.random.uniform(ks[4], (bs, hw, 3), jnp.float32, -1.0, 1.0)
    pos = jax.random.normal(ks[5], (hw, bs, d_model), jnp.float32)
    query_pos = jax.random.normal(ks[6], (nq, bs, d_model), jnp.float32)
    query_sine_embed = jax.random.normal(ks[7], (nq, bs, d_model), jnp.float32)

    out, src_weight = transformer_decoder_layer_forward(
        params, tgt, memory, query_coords_float, key_coords_float,
        pos, query_pos, query_sine_embed,
        nhead=nhead, quant_grid_length=quant_grid_length, grid_size=grid_size,
        abs_pos=True, is_first=True)

    jax.block_until_ready((out, src_weight))
    assert out.shape == (bs, nq, d_model)
    assert src_weight.shape == (bs, nq, hw)
    assert out.dtype == jnp.float32 and src_weight.dtype == jnp.float32
    print("KERNEL_OK")
</pallas_src>

<mosaic_0001>
module attributes {stable_mosaic.version = 11 : i64} {
  func.func @_multi_linear_kernel(%arg0: i32, %arg1: memref<16x32xf32, #tpu.memory_space<vmem>>, %arg2: memref<32x32xf32, #tpu.memory_space<vmem>>, %arg3: memref<1x32xf32, #tpu.memory_space<vmem>>, %arg4: memref<32x32xf32, #tpu.memory_space<vmem>>, %arg5: memref<1x32xf32, #tpu.memory_space<vmem>>, %arg6: memref<32x32xf32, #tpu.memory_space<vmem>>, %arg7: memref<1x32xf32, #tpu.memory_space<vmem>>, %arg8: memref<16x32xf32, #tpu.memory_space<vmem>>, %arg9: memref<16x32xf32, #tpu.memory_space<vmem>>, %arg10: memref<16x32xf32, #tpu.memory_space<vmem>>) attributes {dimension_semantics = [#tpu.dimension_semantics<parallel>], iteration_bounds = array<i64: 1>, scalar_prefetch = 0 : i64, scratch_operands = 0 : i64, tpu.core_type = #tpu.core_type<tc>, window_params = [{transform_indices = @transform_0, window_bounds = array<i64: 16, 32>}, {pipeline_mode = #tpu.pipeline_mode<synchronous>, transform_indices = @transform_1, window_bounds = array<i64: 32, 32>}, {pipeline_mode = #tpu.pipeline_mode<synchronous>, transform_indices = @transform_2, window_bounds = array<i64: 1, 32>}, {pipeline_mode = #tpu.pipeline_mode<synchronous>, transform_indices = @transform_3, window_bounds = array<i64: 32, 32>}, {pipeline_mode = #tpu.pipeline_mode<synchronous>, transform_indices = @transform_4, window_bounds = array<i64: 1, 32>}, {pipeline_mode = #tpu.pipeline_mode<synchronous>, transform_indices = @transform_5, window_bounds = array<i64: 32, 32>}, {pipeline_mode = #tpu.pipeline_mode<synchronous>, transform_indices = @transform_6, window_bounds = array<i64: 1, 32>}, {transform_indices = @transform_7, window_bounds = array<i64: 16, 32>}, {transform_indices = @transform_8, window_bounds = array<i64: 16, 32>}, {transform_indices = @transform_9, window_bounds = array<i64: 16, 32>}]} {
    %c0 = arith.constant 0 : index
    %c0_0 = arith.constant 0 : index
    %0 = vector.load %arg1[%c0, %c0_0] : memref<16x32xf32, #tpu.memory_space<vmem>>, vector<16x32xf32>
    %c0_1 = arith.constant 0 : index
    %c0_2 = arith.constant 0 : index
    %1 = vector.load %arg2[%c0_1, %c0_2] : memref<32x32xf32, #tpu.memory_space<vmem>>, vector<32x32xf32>
    %cst = arith.constant dense<0.000000e+00> : vector<16x32xf32>
    %2 = tpu.matmul %0, %1, %cst {dimension_numbers = #tpu.dot_dimension_numbers<[1], [0], [0], [1], [0, 0, 1, 1], [], []>} : vector<16x32xf32>, vector<32x32xf32>, vector<16x32xf32> -> vector<16x32xf32>
    %c0_3 = arith.constant 0 : index
    %c0_4 = arith.constant 0 : index
    %3 = vector.load %arg3[%c0_3, %c0_4] : memref<1x32xf32, #tpu.memory_space<vmem>>, vector<1x32xf32>
    %4 = vector.broadcast %3 : vector<1x32xf32> to vector<16x32xf32>
    %5 = arith.addf %2, %4 : vector<16x32xf32>
    %c0_5 = arith.constant 0 : index
    %c0_6 = arith.constant 0 : index
    %6 = vector.load %arg8[%c0_5, %c0_6] : memref<16x32xf32, #tpu.memory_space<vmem>>, vector<16x32xf32>
    tpu.vector_store %arg8[%c0_5, %c0_6], %5 {strides = array<i32>} : memref<16x32xf32, #tpu.memory_space<vmem>>, vector<16x32xf32>,
    %c0_7 = arith.constant 0 : index
    %c0_8 = arith.constant 0 : index
    %7 = vector.load %arg4[%c0_7, %c0_8] : memref<32x32xf32, #tpu.memory_space<vmem>>, vector<32x32xf32>
    %cst_9 = arith.constant dense<0.000000e+00> : vector<16x32xf32>
    %8 = tpu.matmul %0, %7, %cst_9 {dimension_numbers = #tpu.dot_dimension_numbers<[1], [0], [0], [1], [0, 0, 1, 1], [], []>} : vector<16x32xf32>, vector<32x32xf32>, vector<16x32xf32> -> vector<16x32xf32>
    %c0_10 = arith.constant 0 : index
    %c0_11 = arith.constant 0 : index
    %9 = vector.load %arg5[%c0_10, %c0_11] : memref<1x32xf32, #tpu.memory_space<vmem>>, vector<1x32xf32>
    %10 = vector.broadcast %9 : vector<1x32xf32> to vector<16x32xf32>
    %11 = arith.addf %8, %10 : vector<16x32xf32>
    %c0_12 = arith.constant 0 : index
    %c0_13 = arith.constant 0 : index
    %12 = vector.load %arg9[%c0_12, %c0_13] : memref<16x32xf32, #tpu.memory_space<vmem>>, vector<16x32xf32>
    tpu.vector_store %arg9[%c0_12, %c0_13], %11 {strides = array<i32>} : memref<16x32xf32, #tpu.memory_space<vmem>>, vector<16x32xf32>,
    %c0_14 = arith.constant 0 : index
    %c0_15 = arith.constant 0 : index
    %13 = vector.load %arg6[%c0_14, %c0_15] : memref<32x32xf32, #tpu.memory_space<vmem>>, vector<32x32xf32>
    %cst_16 = arith.constant dense<0.000000e+00> : vector<16x32xf32>
    %14 = tpu.matmul %0, %13, %cst_16 {dimension_numbers = #tpu.dot_dimension_numbers<[1], [0], [0], [1], [0, 0, 1, 1], [], []>} : vector<16x32xf32>, vector<32x32xf32>, vector<16x32xf32> -> vector<16x32xf32>
    %c0_17 = arith.constant 0 : index
    %c0_18 = arith.constant 0 : index
    %15 = vector.load %arg7[%c0_17, %c0_18] : memref<1x32xf32, #tpu.memory_space<vmem>>, vector<1x32xf32>
    %16 = vector.broadcast %15 : vector<1x32xf32> to vector<16x32xf32>
    %17 = arith.addf %14, %16 : vector<16x32xf32>
    %c0_19 = arith.constant 0 : index
    %c0_20 = arith.constant 0 : index
    %18 = vector.load %arg10[%c0_19, %c0_20] : memref<16x32xf32, #tpu.memory_space<vmem>>, vector<16x32xf32>
    tpu.vector_store %arg10[%c0_19, %c0_20], %17 {strides = array<i32>} : memref<16x32xf32, #tpu.memory_space<vmem>>, vector<16x32xf32>,
    return
  }
  func.func @transform_0(%arg0: i32) -> (i32, i32) {
    %c0_i32 = arith.constant 0 : i32
    %c0_i32_0 = arith.constant 0 : i32
    return %arg0, %c0_i32 : i32, i32
  }
  func.func @transform_1(%arg0: i32) -> (i32, i32) {
    %c0_i32 = arith.constant 0 : i32
    %c0_i32_0 = arith.constant 0 : i32
    %c0_i32_1 = arith.constant 0 : i32
    return %c0_i32, %c0_i32_0 : i32, i32
  }
  func.func @transform_2(%arg0: i32) -> (i32, i32) {
    %c0_i32 = arith.constant 0 : i32
    %c0_i32_0 = arith.constant 0 : i32
    %c0_i32_1 = arith.constant 0 : i32
    return %c0_i32, %c0_i32_0 : i32, i32
  }
  func.func @transform_3(%arg0: i32) -> (i32, i32) {
    %c0_i32 = arith.constant 0 : i32
    %c0_i32_0 = arith.constant 0 : i32
    %c0_i32_1 = arith.constant 0 : i32
    return %c0_i32, %c0_i32_0 : i32, i32
  }
  func.func @transform_4(%arg0: i32) -> (i32, i32) {
    %c0_i32 = arith.constant 0 : i32
    %c0_i32_0 = arith.constant 0 : i32
    %c0_i32_1 = arith.constant 0 : i32
    return %c0_i32, %c0_i32_0 : i32, i32
  }
  func.func @transform_5(%arg0: i32) -> (i32, i32) {
    %c0_i32 = arith.constant 0 : i32
    %c0_i32_0 = arith.constant 0 : i32
    %c0_i32_1 = arith.constant 0 : i32
    return %c0_i32, %c0_i32_0 : i32, i32
  }
  func.func @transform_6(%arg0: i32) -> (i32, i32) {
    %c0_i32 = arith.constant 0 : i32
    %c0_i32_0 = arith.constant 0 : i32
    %c0_i32_1 = arith.constant 0 : i32
    return %c0_i32, %c0_i32_0 : i32, i32
  }
  func.func @transform_7(%arg0: i32) -> (i32, i32) {
    %c0_i32 = arith.constant 0 : i32
    %c0_i32_0 = arith.constant 0 : i32
    return %arg0, %c0_i32 : i32, i32
  }
  func.func @transform_8(%arg0: i32) -> (i32, i32) {
    %c0_i32 = arith.constant 0 : i32
    %c0_i32_0 = arith.constant 0 : i32
    return %arg0, %c0_i32 : i32, i32
  }
  func.func @transform_9(%arg0: i32) -> (i32, i32) {
    %c0_i32 = arith.constant 0 : i32
    %c0_i32_0 = arith.constant 0 : i32
    return %arg0, %c0_i32 : i32, i32
  }
}

</mosaic_0001>

<llo_original>
// kernel: tpu_custom_call.1
$region0: #{tpu_custom_call.1}
  #allocation0 [shape = 'u32[]', space=smem, size = 0x4, offset = 0x4, fixed_abs, tag = 'smem constant byte address 0x4 - core index']
  #allocation1 [shape = 'u32[144,128]{1,0:T(1,128)}', space=vmem, size = 0x12000, scoped, tag = 'internal scratch']
  %s0 = inlined_call_operand.hbm [shape: f32[16,32], index: 0, kind: input, shape index: {}]
  %s1 = inlined_call_operand.hbm [shape: f32[32,32], index: 1, kind: input, shape index: {}]
  %s2 = inlined_call_operand.vmem [shape: f32[1,32], index: 2, kind: input, shape index: {}]
  %s3 = inlined_call_operand.hbm [shape: f32[32,32], index: 3, kind: input, shape index: {}]
  %s4 = inlined_call_operand.vmem [shape: f32[1,32], index: 4, kind: input, shape index: {}]
  %s5 = inlined_call_operand.hbm [shape: f32[32,32], index: 5, kind: input, shape index: {}]
  %s6 = inlined_call_operand.vmem [shape: f32[1,32], index: 6, kind: input, shape index: {}]
  %s7 = inlined_call_operand.hbm [shape: f32[16,32], index: 7, kind: output, shape index: {0}]
  %s8 = inlined_call_operand.hbm [shape: f32[16,32], index: 8, kind: output, shape index: {1}]
  %s9 = inlined_call_operand.hbm [shape: f32[16,32], index: 9, kind: output, shape index: {2}]
  %10 = xla_tuple %s7, %s8, %s9
  %s11 = sld [smem:[#allocation0]]
  $region70: #{tpu_custom_call.1} parent=0
    _
  %s13 = ssub.s32 1, %s11
  %s14 = scalar_select 0, %s13, %s11
  $region1: #{tpu_custom_call.1} parent=0
    #allocation2 [shape = 'u8[8192]{0}', space=vmem, size = 0x2000, scoped, tag = 'input window, operand 0, single buffered']
    #allocation3 [shape = 's32[1]{0}', space=sflag, size = 0x4, scoped, tag = 'scoped memory for tpu_custom_call.1']
    #allocation4 [shape = 's32[1]{0}', space=sflag, size = 0x4, scoped, tag = 'scoped memory for tpu_custom_call.1']
    #allocation5 [shape = 'u8[16384]{0}', space=vmem, size = 0x4000, scoped, tag = 'input window, operand 1, single buffered']
    #allocation6 [shape = 's32[1]{0}', space=sflag, size = 0x4, scoped, tag = 'scoped memory for tpu_custom_call.1']
    #allocation7 [shape = 'u8[16384]{0}', space=vmem, size = 0x4000, scoped, tag = 'input window, operand 3, single buffered']
    #allocation8 [shape = 'u8[16384]{0}', space=vmem, size = 0x4000, scoped, tag = 'input window, operand 5, single buffered']
    #allocation9 [shape = 's32[1]{0}', space=sflag, size = 0x4, scoped, tag = 'scoped memory for tpu_custom_call.1']
    #allocation10 [shape = 'u8[8192]{0}', space=vmem, size = 0x2000, scoped, tag = 'output window, operand 0, single buffered']
    #allocation11 [shape = 'u8[8192]{0}', space=vmem, size = 0x2000, scoped, tag = 'output window, operand 1, single buffered']
    #allocation12 [shape = 's32[1]{0}', space=sflag, size = 0x4, scoped, tag = 'scoped memory for tpu_custom_call.1']
    #allocation13 [shape = 'u8[8192]{0}', space=vmem, size = 0x2000, scoped, tag = 'output window, operand 2, single buffered']
    %15 = vsyncpa [#allocation3], 0
    %16 = vsyncpa [#allocation6], 0
    %17 = vsyncpa [#allocation9], 0
    %18 = vsyncpa [#allocation4], 0
    %19 = vsyncpa [#allocation12], 0
    // Predicated region
    $region2: #{tpu_custom_call.1} parent=1 // pred_check
      _
    $region3: #{tpu_custom_call.1} parent=1 // pred_check_branch
      %21 = sbr.rel (0) target = $region5
    $region4: #{tpu_custom_call.1} parent=1 // pred_region
      %s23 = ssub.s32 256, 256
      %24 = vsyncadd [#allocation3], %s23
      %s25 = sshll.u32 [#allocation2], 4
      %s26 = int_to_ptr.vmem [resolvable:$true] %s25
      %31 = dma.hbm_to_vmem [thread:$0]  %s0, 256, %s26, [#allocation3], 128, 128, 8
    $region5: #{tpu_custom_call.1} parent=1 // pred_fallthru
      _
    // Predicated region
    $region6: #{tpu_custom_call.1} parent=1 // pred_check
      _
    $region7: #{tpu_custom_call.1} parent=1 // pred_check_branch
      %33 = sbr.rel (0) target = $region9
    $region8: #{tpu_custom_call.1} parent=1 // pred_region
      %s35 = ssub.s32 512, 512
      %36 = vsyncadd [#allocation6], %s35
      %s37 = sshll.u32 [#allocation5], 4
      %s38 = int_to_ptr.vmem [resolvable:$true] %s37
      %43 = dma.hbm_to_vmem [thread:$0]  %s1, 512, %s38, [#allocation6], 128, 128, 8
    $region9: #{tpu_custom_call.1} parent=1 // pred_fallthru
      _
    // Predicated region
    $region10: #{tpu_custom_call.1} parent=1 // pred_check
      _
    $region11: #{tpu_custom_call.1} parent=1 // pred_check_branch
      %45 = sbr.rel (0) target = $region13
    $region12: #{tpu_custom_call.1} parent=1 // pred_region
      _
    $region13: #{tpu_custom_call.1} parent=1 // pred_fallthru
      _
    // Predicated region
    $region14: #{tpu_custom_call.1} parent=1 // pred_check
      _
    $region15: #{tpu_custom_call.1} parent=1 // pred_check_branch
      %47 = sbr.rel (0) target = $region17
    $region16: #{tpu_custom_call.1} parent=1 // pred_region
      %s49 = ssub.s32 512, 512
      %50 = vsyncadd [#allocation6], %s49
      %s51 = sshll.u32 [#allocation7], 4
      %s52 = int_to_ptr.vmem [resolvable:$true] %s51
      %57 = dma.hbm_to_vmem [thread:$0]  %s3, 512, %s52, [#allocation6], 128, 128, 8
    $region17: #{tpu_custom_call.1} parent=1 // pred_fallthru
      _
    // Predicated region
    $region18: #{tpu_custom_call.1} parent=1 // pred_check
      _
    $region19: #{tpu_custom_call.1} parent=1 // pred_check_branch
      %59 = sbr.rel (0) target = $region21
    $region20: #{tpu_custom_call.1} parent=1 // pred_region
      _
    $region21: #{tpu_custom_call.1} parent=1 // pred_fallthru
      _
    // Predicated region
    $region22: #{tpu_custom_call.1} parent=1 // pred_check
      _
    $region23: #{tpu_custom_call.1} parent=1 // pred_check_branch
      %61 = sbr.rel (0) target = $region25
    $region24: #{tpu_custom_call.1} parent=1 // pred_region
      %s63 = ssub.s32 512, 512
      %64 = vsyncadd [#allocation9], %s63
      %s65 = sshll.u32 [#allocation8], 4
      %s66 = int_to_ptr.vmem [resolvable:$true] %s65
      %71 = dma.hbm_to_vmem [thread:$0]  %s5, 512, %s66, [#allocation9], 128, 128, 8
    $region25: #{tpu_custom_call.1} parent=1 // pred_fallthru
      _
    // Predicated region
    $region26: #{tpu_custom_call.1} parent=1 // pred_check
      _
    $region27: #{tpu_custom_call.1} parent=1 // pred_check_branch
      %73 = sbr.rel (0) target = $region29
    $region28: #{tpu_custom_call.1} parent=1 // pred_region
      _
    $region29: #{tpu_custom_call.1} parent=1 // pred_fallthru
      _
    // Predicated region
    $region30: #{tpu_custom_call.1} parent=1 // pred_check
      _
    $region31: #{tpu_custom_call.1} parent=1 // pred_check_branch
      %75 = sbr.rel (0) target = $region33
    $region32: #{tpu_custom_call.1} parent=1 // pred_region
      %76 = dma.done [#allocation3], 256
    $region33: #{tpu_custom_call.1} parent=1 // pred_fallthru
      _
    // Predicated region
    $region34: #{tpu_custom_call.1} parent=1 // pred_check
      _
    $region35: #{tpu_custom_call.1} parent=1 // pred_check_branch
      %78 = sbr.rel (0) target = $region37
    $region36: #{tpu_custom_call.1} parent=1 // pred_region
      %79 = dma.done [#allocation6], 512
    $region37: #{tpu_custom_call.1} parent=1 // pred_fallthru
      _
    // Predicated region
    $region38: #{tpu_custom_call.1} parent=1 // pred_check
      _
    $region39: #{tpu_custom_call.1} parent=1 // pred_check_branch
      %81 = sbr.rel (0) target = $region41
    $region40: #{tpu_custom_call.1} parent=1 // pred_region
      %82 = dma.done [#allocation6], 512
    $region41: #{tpu_custom_call.1} parent=1 // pred_fallthru
      _
    // Predicated region
    $region42: #{tpu_custom_call.1} parent=1 // pred_check
      _
    $region43: #{tpu_custom_call.1} parent=1 // pred_check_branch
      %84 = sbr.rel (0) target = $region45
    $region44: #{tpu_custom_call.1} parent=1 // pred_region
      %85 = dma.done [#allocation9], 512
    $region45: #{tpu_custom_call.1} parent=1 // pred_fallthru
      _
    %v86 = vld [vmem:[#allocation2] sm:$0xff]
    %v87 = vld [vmem:[#allocation2 + $0x8] sm:$0xff]
    %v88 = vld [vmem:[#allocation5] sm:$0xff]
    %v89 = vld [vmem:[#allocation5 + $0x8] sm:$0xff]
    %v90 = vld [vmem:[#allocation5 + $0x10] sm:$0xff]
    %v91 = vld [vmem:[#allocation5 + $0x18] sm:$0xff]
    %v92 = vld [vmem:[%s2] sm:$0x1]
    %v94 = vlaneseq
    %v95 = vshrl.u32 %v94, 7
    %v96 = vsub.s32 0, %v95
    %v97 = vrot.slane %v92, %v96
    %vm99 = vcmask 261120
    %v101 = vsel %vm99, %v86, 0
    %v104 = vsel %vm99, %v87, 0
    %106 = vmatprep.subr.mxu0 0.0
    %107 = vmatpush1.msra.mxu0 %v88
    %108 = vmatprep.subr.mxu0 0.0
    %109 = vmatpush1.msra.mxu0 %v89
    %110 = vmatprep.subr.mxu0 0.0
    %111 = vmatpush1.msra.mxu0 %v90
    %112 = vmatprep.subr.mxu0 0.0
    %113 = vmatpush1.msra.mxu0 %v91
    %114 = vmatprep.subr.mxu0 0.0
    %115 = vmatpush1.msra.mxu0 0.0
    %116 = vmatprep.subr.mxu0 0.0
    %117 = vmatpush1.msra.mxu0 0.0
    %118 = vmatprep.subr.mxu0 0.0
    %119 = vmatpush1.msra.mxu0 0.0
    %120 = vmatprep.subr.mxu0 0.0
    %121 = vmatpush1.msra.mxu0 0.0
    %122 = vmatprep.subr.mxu0 0.0
    %123 = vmatpush1.msra.mxu0 0.0
    %124 = vmatprep.subr.mxu0 0.0
    %125 = vmatpush1.msra.mxu0 0.0
    %126 = vmatprep.subr.mxu0 0.0
    %127 = vmatpush1.msra.mxu0 0.0
    %128 = vmatprep.subr.mxu0 0.0
    %129 = vmatpush1.msra.mxu0 0.0
    %130 = vmatprep.subr.mxu0 0.0
    %131 = vmatpush1.msra.mxu0 0.0
    %132 = vmatprep.subr.mxu0 0.0
    %133 = vmatpush1.msra.mxu0 0.0
    %134 = vmatprep.subr.mxu0 0.0
    %135 = vmatpush1.msra.mxu0 0.0
    %136 = vmatprep.subr.mxu0 0.0
    %137 = vmatpush1.msra.mxu0 0.0
    %138 = vmatprep.subr.mxu0 0.0
    %139 = vmatpush1.msra.mxu0 0.0
    %140 = vmatprep.subr.mxu0 0.0
    %141 = vmatpush1.msra.mxu0 0.0
    %142 = vmatprep.subr.mxu0 0.0
    %143 = vmatpush1.msra.mxu0 0.0
    %144 = vmatprep.subr.mxu0 0.0
    %145 = vmatpush1.msra.mxu0 0.0
    %146 = vmatprep.subr.mxu0 0.0
    %147 = vmatpush1.msra.mxu0 0.0
    %148 = vmatprep.subr.mxu0 0.0
    %149 = vmatpush1.msra.mxu0 0.0
    %150 = vmatprep.subr.mxu0 0.0
    %151 = vmatpush1.msra.mxu0 0.0
    %152 = vmatprep.subr.mxu0 0.0
    %153 = vmatpush1.msra.mxu0 0.0
    %154 = vmatprep.subr.mxu0 0.0
    %155 = vmatpush1.msra.mxu0 0.0
    %156 = vmatprep.subr.mxu0 0.0
    %157 = vmatpush1.msra.mxu0 0.0
    %158 = vmatprep.subr.mxu0 0.0
    %159 = vmatpush1.msra.mxu0 0.0
    %160 = vmatprep.subr.mxu0 0.0
    %161 = vmatpush1.msra.mxu0 0.0
    %162 = vmatprep.subr.mxu0 0.0
    %163 = vmatpush1.msra.mxu0 0.0
    %164 = vmatprep.subr.mxu0 0.0
    %165 = vmatpush1.msra.mxu0 0.0
    %166 = vmatprep.subr.mxu0 0.0
    %167 = vmatpush1.msra.mxu0 0.0
    %168 = vmatprep.subr.mxu0 0.0
    %169 = vmatpush1.msra.mxu0 0.0
    %170 = vmatprep.mubr.f32.mxu0 0.0
    %171 = vmatmul.mubr.f32.gmra.mrb[0].mxu0 %v101
    %v172 = vpop.f32.mrb[0].mxu0
    %v173 = vadd.f32 %v97, %v172
    %v174 = vpop.f32.mrb[0].mxu0
    %175 = vmatprep.mubr.f32.mxu0 0.0
    %176 = vmatmul.mubr.f32.gmra.mrb[0].mxu0 %v104
    %v177 = vpop.f32.mrb[0].mxu0
    %v178 = vadd.f32 %v97, %v177
    %v179 = vpop.f32.mrb[0].mxu0
    %180 = vdwg.mxu0
    %181 = vst.msk [vmem:[#allocation10] sm:$0xff] %vm99, %v173
    %182 = vst.msk [vmem:[#allocation10 + $0x8] sm:$0xff] %vm99, %v178
    %v183 = vld [vmem:[#allocation7] sm:$0xff]
    %v184 = vld [vmem:[#allocation7 + $0x8] sm:$0xff]
    %v185 = vld [vmem:[#allocation7 + $0x10] sm:$0xff]
    %v186 = vld [vmem:[#allocation7 + $0x18] sm:$0xff]
    %v187 = vld [vmem:[%s4] sm:$0x1]
    %v189 = vlaneseq
    %v190 = vshrl.u32 %v189, 7
    %v191 = vsub.s32 0, %v190
    %v192 = vrot.slane %v187, %v191
    %194 = vmatprep.subr.mxu0 0.0
    %195 = vmatpush1.msra.mxu0 %v183
    %196 = vmatprep.subr.mxu0 0.0
    %197 = vmatpush1.msra.mxu0 %v184
    %198 = vmatprep.subr.mxu0 0.0
    %199 = vmatpush1.msra.mxu0 %v185
    %200 = vmatprep.subr.mxu0 0.0
    %201 = vmatpush1.msra.mxu0 %v186
    %202 = vmatprep.subr.mxu0 0.0
    %203 = vmatpush1.msra.mxu0 0.0
    %204 = vmatprep.subr.mxu0 0.0
    %205 = vmatpush1.msra.mxu0 0.0
    %206 = vmatprep.subr.mxu0 0.0
    %207 = vmatpush1.msra.mxu0 0.0
    %208 = vmatprep.subr.mxu0 0.0
    %209 = vmatpush1.msra.mxu0 0.0
    %210 = vmatprep.subr.mxu0 0.0
    %211 = vmatpush1.msra.mxu0 0.0
    %212 = vmatprep.subr.mxu0 0.0
    %213 = vmatpush1.msra.mxu0 0.0
    %214 = vmatprep.subr.mxu0 0.0
    %215 = vmatpush1.msra.mxu0 0.0
    %216 = vmatprep.subr.mxu0 0.0
    %217 = vmatpush1.msra.mxu0 0.0
    %218 = vmatprep.subr.mxu0 0.0
    %219 = vmatpush1.msra.mxu0 0.0
    %220 = vmatprep.subr.mxu0 0.0
    %221 = vmatpush1.msra.mxu0 0.0
    %222 = vmatprep.subr.mxu0 0.0
    %223 = vmatpush1.msra.mxu0 0.0
    %224 = vmatprep.subr.mxu0 0.0
    %225 = vmatpush1.msra.mxu0 0.0
    %226 = vmatprep.subr.mxu0 0.0
    %227 = vmatpush1.msra.mxu0 0.0
    %228 = vmatprep.subr.mxu0 0.0
    %229 = vmatpush1.msra.mxu0 0.0
    %230 = vmatprep.subr.mxu0 0.0
    %231 = vmatpush1.msra.mxu0 0.0
    %232 = vmatprep.subr.mxu0 0.0
    %233 = vmatpush1.msra.mxu0 0.0
    %234 = vmatprep.subr.mxu0 0.0
    %235 = vmatpush1.msra.mxu0 0.0
    %236 = vmatprep.subr.mxu0 0.0
    %237 = vmatpush1.msra.mxu0 0.0
    %238 = vmatprep.subr.mxu0 0.0
    %239 = vmatpush1.msra.mxu0 0.0
    %240 = vmatprep.subr.mxu0 0.0
    %241 = vmatpush1.msra.mxu0 0.0
    %242 = vmatprep.subr.mxu0 0.0
    %243 = vmatpush1.msra.mxu0 0.0
    %244 = vmatprep.subr.mxu0 0.0
    %245 = vmatpush1.msra.mxu0 0.0
    %246 = vmatprep.subr.mxu0 0.0
    %247 = vmatpush1.msra.mxu0 0.0
    %248 = vmatprep.subr.mxu0 0.0
    %249 = vmatpush1.msra.mxu0 0.0
    %250 = vmatprep.subr.mxu0 0.0
    %251 = vmatpush1.msra.mxu0 0.0
    %252 = vmatprep.subr.mxu0 0.0
    %253 = vmatpush1.msra.mxu0 0.0
    %254 = vmatprep.subr.mxu0 0.0
    %255 = vmatpush1.msra.mxu0 0.0
    %256 = vmatprep.subr.mxu0 0.0
    %257 = vmatpush1.msra.mxu0 0.0
    %258 = vmatprep.mubr.f32.mxu0 0.0
    %259 = vmatmul.mubr.f32.gmra.mrb[0].mxu0 %v101
    %v260 = vpop.f32.mrb[0].mxu0
    %v261 = vadd.f32 %v192, %v260
    %v262 = vpop.f32.mrb[0].mxu0
    %263 = vmatprep.mubr.f32.mxu0 0.0
    %264 = vmatmul.mubr.f32.gmra.mrb[0].mxu0 %v104
    %v265 = vpop.f32.mrb[0].mxu0
    %v266 = vadd.f32 %v192, %v265
    %v267 = vpop.f32.mrb[0].mxu0
    %268 = vdwg.mxu0
    %269 = vst.msk [vmem:[#allocation11] sm:$0xff] %vm99, %v261
    %270 = vst.msk [vmem:[#allocation11 + $0x8] sm:$0xff] %vm99, %v266
    %v271 = vld [vmem:[#allocation8] sm:$0xff]
    %v272 = vld [vmem:[#allocation8 + $0x8] sm:$0xff]
    %v273 = vld [vmem:[#allocation8 + $0x10] sm:$0xff]
    %v274 = vld [vmem:[#allocation8 + $0x18] sm:$0xff]
    %v275 = vld [vmem:[%s6] sm:$0x1]
    %v277 = vlaneseq
    %v278 = vshrl.u32 %v277, 7
    %v279 = vsub.s32 0, %v278
    %v280 = vrot.slane %v275, %v279
    %282 = vmatprep.subr.mxu0 0.0
    %283 = vmatpush1.msra.mxu0 %v271
    %284 = vmatprep.subr.mxu0 0.0
    %285 = vmatpush1.msra.mxu0 %v272
    %286 = vmatprep.subr.mxu0 0.0
    %287 = vmatpush1.msra.mxu0 %v273
    %288 = vmatprep.subr.mxu0 0.0
    %289 = vmatpush1.msra.mxu0 %v274
    %290 = vmatprep.subr.mxu0 0.0
    %291 = vmatpush1.msra.mxu0 0.0
    %292 = vmatprep.subr.mxu0 0.0
    %293 = vmatpush1.msra.mxu0 0.0
    %294 = vmatprep.subr.mxu0 0.0
    %295 = vmatpush1.msra.mxu0 0.0
    %296 = vmatprep.subr.mxu0 0.0
    %297 = vmatpush1.msra.mxu0 0.0
    %298 = vmatprep.subr.mxu0 0.0
    %299 = vmatpush1.msra.mxu0 0.0
    %300 = vmatprep.subr.mxu0 0.0
    %301 = vmatpush1.msra.mxu0 0.0
    %302 = vmatprep.subr.mxu0 0.0
    %303 = vmatpush1.msra.mxu0 0.0
    %304 = vmatprep.subr.mxu0 0.0
    %305 = vmatpush1.msra.mxu0 0.0
    %306 = vmatprep.subr.mxu0 0.0
    %307 = vmatpush1.msra.mxu0 0.0
    %308 = vmatprep.subr.mxu0 0.0
    %309 = vmatpush1.msra.mxu0 0.0
    %310 = vmatprep.subr.mxu0 0.0
    %311 = vmatpush1.msra.mxu0 0.0
    %312 = vmatprep.subr.mxu0 0.0
    %313 = vmatpush1.msra.mxu0 0.0
    %314 = vmatprep.subr.mxu0 0.0
    %315 = vmatpush1.msra.mxu0 0.0
    %316 = vmatprep.subr.mxu0 0.0
    %317 = vmatpush1.msra.mxu0 0.0
    %318 = vmatprep.subr.mxu0 0.0
    %319 = vmatpush1.msra.mxu0 0.0
    %320 = vmatprep.subr.mxu0 0.0
    %321 = vmatpush1.msra.mxu0 0.0
    %322 = vmatprep.subr.mxu0 0.0
    %323 = vmatpush1.msra.mxu0 0.0
    %324 = vmatprep.subr.mxu0 0.0
    %325 = vmatpush1.msra.mxu0 0.0
    %326 = vmatprep.subr.mxu0 0.0
    %327 = vmatpush1.msra.mxu0 0.0
    %328 = vmatprep.subr.mxu0 0.0
    %329 = vmatpush1.msra.mxu0 0.0
    %330 = vmatprep.subr.mxu0 0.0
    %331 = vmatpush1.msra.mxu0 0.0
    %332 = vmatprep.subr.mxu0 0.0
    %333 = vmatpush1.msra.mxu0 0.0
    %334 = vmatprep.subr.mxu0 0.0
    %335 = vmatpush1.msra.mxu0 0.0
    %336 = vmatprep.subr.mxu0 0.0
    %337 = vmatpush1.msra.mxu0 0.0
    %338 = vmatprep.subr.mxu0 0.0
    %339 = vmatpush1.msra.mxu0 0.0
    %340 = vmatprep.subr.mxu0 0.0
    %341 = vmatpush1.msra.mxu0 0.0
    %342 = vmatprep.subr.mxu0 0.0
    %343 = vmatpush1.msra.mxu0 0.0
    %344 = vmatprep.subr.mxu0 0.0
    %345 = vmatpush1.msra.mxu0 0.0
    %346 = vmatprep.mubr.f32.mxu0 0.0
    %347 = vmatmul.mubr.f32.gmra.mrb[0].mxu0 %v101
    %v348 = vpop.f32.mrb[0].mxu0
    %v349 = vadd.f32 %v280, %v348
    %v350 = vpop.f32.mrb[0].mxu0
    %351 = vmatprep.mubr.f32.mxu0 0.0
    %352 = vmatmul.mubr.f32.gmra.mrb[0].mxu0 %v104
    %v353 = vpop.f32.mrb[0].mxu0
    %v354 = vadd.f32 %v280, %v353
    %v355 = vpop.f32.mrb[0].mxu0
    %356 = vdwg.mxu0
    %357 = vst.msk [vmem:[#allocation13] sm:$0xff] %vm99, %v349
    %358 = vst.msk [vmem:[#allocation13 + $0x8] sm:$0xff] %vm99, %v354
    // Predicated region
    $region46: #{tpu_custom_call.1} parent=1 // pred_check
      _
    $region47: #{tpu_custom_call.1} parent=1 // pred_check_branch
      %360 = sbr.rel (0) target = $region49
    $region48: #{tpu_custom_call.1} parent=1 // pred_region
      %s362 = ssub.s32 256, 256
      %363 = vsyncadd [#allocation4], %s362
      %s364 = sshll.u32 [#allocation10], 4
      %s365 = int_to_ptr.vmem [resolvable:$true] %s364
      %370 = dma.vmem_to_hbm [thread:$0]  %s365, 256, %s7, [#allocation4], 128, 128, 8
    $region49: #{tpu_custom_call.1} parent=1 // pred_fallthru
      _
    // Predicated region
    $region50: #{tpu_custom_call.1} parent=1 // pred_check
      _
    $region51: #{tpu_custom_call.1} parent=1 // pred_check_branch
      %372 = sbr.rel (0) target = $region53
    $region52: #{tpu_custom_call.1} parent=1 // pred_region
      %s374 = ssub.s32 256, 256
      %375 = vsyncadd [#allocation12], %s374
      %s376 = sshll.u32 [#allocation11], 4
      %s377 = int_to_ptr.vmem [resolvable:$true] %s376
      %382 = dma.vmem_to_hbm [thread:$0]  %s377, 256, %s8, [#allocation12], 128, 128, 8
    $region53: #{tpu_custom_call.1} parent=1 // pred_fallthru
      _
    // Predicated region
    $region54: #{tpu_custom_call.1} parent=1 // pred_check
      _
    $region55: #{tpu_custom_call.1} parent=1 // pred_check_branch
      %384 = sbr.rel (0) target = $region57
    $region56: #{tpu_custom_call.1} parent=1 // pred_region
      %s386 = ssub.s32 256, 256
      %387 = vsyncadd [#allocation12], %s386
      %s388 = sshll.u32 [#allocation13], 4
      %s389 = int_to_ptr.vmem [resolvable:$true] %s388
      %394 = dma.vmem_to_hbm [thread:$0]  %s389, 256, %s9, [#allocation12], 128, 128, 8
    $region57: #{tpu_custom_call.1} parent=1 // pred_fallthru
      _
    // Predicated region
    $region58: #{tpu_custom_call.1} parent=1 // pred_check
      _
    $region59: #{tpu_custom_call.1} parent=1 // pred_check_branch
      %396 = sbr.rel (0) target = $region61
    $region60: #{tpu_custom_call.1} parent=1 // pred_region
      %397 = dma.done [#allocation4], 256
    $region61: #{tpu_custom_call.1} parent=1 // pred_fallthru
      _
    // Predicated region
    $region62: #{tpu_custom_call.1} parent=1 // pred_check
      _
    $region63: #{tpu_custom_call.1} parent=1 // pred_check_branch
      %399 = sbr.rel (0) target = $region65
    $region64: #{tpu_custom_call.1} parent=1 // pred_region
      %400 = dma.done [#allocation12], 256
    $region65: #{tpu_custom_call.1} parent=1 // pred_fallthru
      _
    // Predicated region
    $region66: #{tpu_custom_call.1} parent=1 // pred_check
      _
    $region67: #{tpu_custom_call.1} parent=1 // pred_check_branch
      %402 = sbr.rel (0) target = $region69
    $region68: #{tpu_custom_call.1} parent=1 // pred_region
      %403 = dma.done [#allocation12], 256
    $region69: #{tpu_custom_call.1} parent=1 // pred_fallthru
      _
    %404 = vsyncpa [#allocation3], 1
    %405 = vsyncpa [#allocation6], 1
    %406 = vsyncpa [#allocation9], 1
    %407 = vsyncpa [#allocation4], 1
    %408 = vsyncpa [#allocation12], 1

</llo_original>
